<compile_context>
chip_gen: v7x
topology: tpu7x:2x2x1
jax: 0.10.0
libtpu: 0.0.40
codegen_flags: <defaults>
</compile_context>

<pallas_src>
import jax
import jax.numpy as jnp
from jax.experimental import pallas as pl
from jax.experimental.pallas import tpu as pltpu

THRESHOLD = 1.0
LEAK = 0.3
LN_EPS = 1e-5
SPIKE_EPS = 1e-10

_ITEM = 4          # accounting in f32 bytes (conservative when inputs are bf16)
_N_TEMPS = 4       # ~live (tile, HW) f32 temporaries inside the body (xn, mp, keep, memv)


# --------------------------------------------------------------------------
# Hardware introspection (safe fallbacks everywhere)
# --------------------------------------------------------------------------
def _vmem_capacity_bytes():
    try:
        return int(pltpu.get_tpu_info().vmem_capacity_bytes)
    except Exception:
        pass
    try:
        kind = jax.devices()[0].device_kind.lower()
        if ("v5 lite" in kind) or ("v5e" in kind) or ("v5litepod" in kind) or ("v6" in kind):
            return 128 * 1024 * 1024
    except Exception:
        pass
    return 64 * 1024 * 1024            # conservative: v7x has 64 MiB per TensorCore


def _num_tensorcores():
    try:
        n = getattr(jax.devices()[0], "num_cores", None)
        if n:
            return int(n)
    except Exception:
        pass
    return 1


def _vmem_budget():
    # Big-VMEM parts (v5e/v6e: 128 MiB) can afford larger tiles / fewer grid
    # steps; 64 MiB/TC parts (v7x) stay lean.
    cap = _vmem_capacity_bytes()
    return 48 * 1024 * 1024 if cap >= 96 * 1024 * 1024 else 24 * 1024 * 1024


def _vmem_limit(footprint_bytes):
    cap = _vmem_capacity_bytes()
    return int(min(max(32 * 1024 * 1024, footprint_bytes + 8 * 1024 * 1024), cap))


def _compiler_params(semantics, footprint_bytes):
    return pltpu.CompilerParams(dimension_semantics=semantics,
                                vmem_limit_bytes=_vmem_limit(footprint_bytes))


def _cost(rows, hw, in_bytes, out_bytes):
    # Bandwidth-bound custom call: flops ~10/elem, one rsqrt per row.
    return pl.CostEstimate(flops=int(10 * rows * hw),
                           transcendentals=int(rows),
                           bytes_accessed=int(in_bytes + out_bytes))


# --------------------------------------------------------------------------
# Kernels
# --------------------------------------------------------------------------
def _layer_norm_rows(x):
    """Layer norm over the last (lane) axis, no affine.

    Two-pass mean/variance: matches torch LayerNorm numerics and avoids the
    E[x^2] - mu^2 cancellation when |mean| >> std."""
    mu = jnp.mean(x, axis=-1, keepdims=True)
    xc = x - mu
    var = jnp.mean(xc * xc, axis=-1, keepdims=True)
    return xc * jax.lax.rsqrt(var + LN_EPS)


def _rlif_body(xn, m, out_ref, memv_ref, newmem_ref):
    mp = m + xn
    keep = (mp - THRESHOLD > 0).astype(jnp.float32)
    memv = mp * keep
    # memv is either 0 or > THRESHOLD (=1), so memv / (memv + 1e-10) == keep to
    # within 1e-10; emitting the mask directly avoids the reciprocal.
    # NOTE: this shortcut assumes THRESHOLD stays O(1) (>> SPIKE_EPS).
    out_ref[...] = keep.astype(out_ref.dtype)
    memv_ref[...] = memv
    newmem_ref[...] = LEAK * (mp - keep * THRESHOLD)


def _rlif_kernel_nomem(x_ref, out_ref, memv_ref, newmem_ref):
    # Reset step: the membrane state is identically zero; skip that HBM stream.
    x = x_ref[...].astype(jnp.float32)
    _rlif_body(_layer_norm_rows(x), 0.0, out_ref, memv_ref, newmem_ref)


def _rlif_kernel(x_ref, mem_ref, out_ref, memv_ref, newmem_ref):
    x = x_ref[...].astype(jnp.float32)
    m = mem_ref[...].astype(jnp.float32)
    _rlif_body(_layer_norm_rows(x), m, out_ref, memv_ref, newmem_ref)


# --------------------------------------------------------------------------
# Tiling helper
# --------------------------------------------------------------------------
def _choose_row_tile(rows, hw, n_streams, prefer_multi):
    """Row tile selection.

    - If everything fits, use one full-extent block (always layout-legal).
    - Otherwise tile rows in multiples of 8 sublanes and let pl.cdiv + masked
      boundary handle the remainder (no padding, no output re-slice).
    - `prefer_multi` (>=2 TensorCores detected) asks for >=2 blocks on the
      parallel axis so megacore sharding engages.
    The VMEM accounting includes double-buffered DMA streams plus ~_N_TEMPS
    tile-sized in-kernel temporaries.
    """
    per_row = (2 * n_streams + _N_TEMPS) * hw * _ITEM
    max_rows = max(8, _vmem_budget() // per_row)
    if rows <= max_rows and not (prefer_multi and rows > 8):
        return rows
    tr = max(8, (min(max_rows, rows) // 8) * 8)
    if prefer_multi:
        half = max(8, (((rows + 1) // 2) + 7) // 8 * 8)
        tr = min(tr, half)
    return tr


# --------------------------------------------------------------------------
# pallas_call builders
# --------------------------------------------------------------------------
def _out_shapes(shape, out_dtype):
    return (jax.ShapeDtypeStruct(shape, out_dtype),
            jax.ShapeDtypeStruct(shape, jnp.float32),
            jax.ShapeDtypeStruct(shape, jnp.float32))


def _rlif_call_nomem(x2, out_dtype, row_tile=None):
    R, HW = x2.shape
    n_streams = 4                                  # 1 input + 3 outputs
    tr = row_tile or _choose_row_tile(R, HW, n_streams, _num_tensorcores() >= 2)
    footprint = (2 * n_streams + _N_TEMPS) * tr * HW * _ITEM
    spec = pl.BlockSpec((tr, HW), lambda i: (i, 0))
    out_item = jnp.dtype(out_dtype).itemsize
    in_bytes = R * HW * x2.dtype.itemsize
    out_bytes = R * HW * (out_item + 8)
    return pl.pallas_call(
        _rlif_kernel_nomem,
        out_shape=_out_shapes((R, HW), out_dtype),
        grid_spec=pltpu.PrefetchScalarGridSpec(
            num_scalar_prefetch=0,
            grid=(pl.cdiv(R, tr),),
            in_specs=[spec],
            out_specs=[spec, spec, spec],
        ),
        compiler_params=_compiler_params(("parallel",), footprint),
        cost_estimate=_cost(R, HW, in_bytes, out_bytes),
    )(x2)


def _rlif_call_flat(x2, m2, out_dtype, row_tile=None):
    R, HW = x2.shape
    n_streams = 5                                  # 2 inputs + 3 outputs
    tr = row_tile or _choose_row_tile(R, HW, n_streams, _num_tensorcores() >= 2)
    footprint = (2 * n_streams + _N_TEMPS) * tr * HW * _ITEM
    spec = pl.BlockSpec((tr, HW), lambda i: (i, 0))
    out_item = jnp.dtype(out_dtype).itemsize
    in_bytes = R * HW * (x2.dtype.itemsize + m2.dtype.itemsize)
    out_bytes = R * HW * (out_item + 8)
    # Alias the membrane input into the new-membrane output: same shape/dtype,
    # avoids allocating a second (R, HW) f32 HBM buffer every recurrent step.
    io_alias = {1: 2} if m2.dtype == jnp.float32 else {}
    return pl.pallas_call(
        _rlif_kernel,
        out_shape=_out_shapes((R, HW), out_dtype),
        grid_spec=pltpu.PrefetchScalarGridSpec(
            num_scalar_prefetch=0,
            grid=(pl.cdiv(R, tr),),
            in_specs=[spec, spec],
            out_specs=[spec, spec, spec],
        ),
        compiler_params=_compiler_params(("parallel",), footprint),
        cost_estimate=_cost(R, HW, in_bytes, out_bytes),
        input_output_aliases=io_alias,
    )(x2, m2)


def _rlif_call_bcast(x3, m2, out_dtype, row_tile=None):
    """mem is the module's persistent (C, H*W) state shared across the batch.

    Grid is (c-tiles, N): the shared membrane tile's block index depends only
    on the OUTER axis, so Pallas skips its re-DMA along the inner batch loop
    and the state is streamed once per c-tile instead of N times.  The inner
    batch axis is 'arbitrary'; the c-tile axis stays 'parallel' for megacore."""
    N, C, HW = x3.shape
    n_streams = 5
    tc = row_tile or _choose_row_tile(C, HW, n_streams, _num_tensorcores() >= 2)
    footprint = (2 * n_streams + _N_TEMPS) * tc * HW * _ITEM
    x_spec = pl.BlockSpec((None, tc, HW), lambda c, n: (n, c, 0))  # kernel sees (tc, HW)
    m_spec = pl.BlockSpec((tc, HW), lambda c, n: (c, 0))           # constant along inner n
    out_item = jnp.dtype(out_dtype).itemsize
    in_bytes = N * C * HW * x3.dtype.itemsize + C * HW * m2.dtype.itemsize
    out_bytes = N * C * HW * (out_item + 8)
    return pl.pallas_call(
        _rlif_kernel,
        out_shape=_out_shapes((N, C, HW), out_dtype),
        grid_spec=pltpu.PrefetchScalarGridSpec(
            num_scalar_prefetch=0,
            grid=(pl.cdiv(C, tc), N),
            in_specs=[x_spec, m_spec],
            out_specs=[x_spec, x_spec, x_spec],
        ),
        compiler_params=_compiler_params(("parallel", "arbitrary"), footprint),
        cost_estimate=_cost(N * C, HW, in_bytes, out_bytes),
    )(x3, m2)


# --------------------------------------------------------------------------
# Public wrapper
# --------------------------------------------------------------------------
def rlif_forward(x, mem=None, steps=0, out_dtype=None, row_tile=None):
    """One RLIF step.

    x         : (N, C, H, W) float input (f32/bf16/f16 streamed natively).
    mem       : membrane state -- None, (C, H, W) (module's persistent state) or
                (N, C, H, W) (state from a previous step).  Ignored (treated as
                zero) when steps == 0, matching reset_parameters().
    out_dtype : dtype of the 0/1 spike output (default: x.dtype; bf16 is exact
                and halves that output stream).
    row_tile  : optional tile-row override (testing / tuning knob, multiple of 8).
    returns (out, mem_out, new_mem); new_mem is the next-step state (N, C, H, W)
    and is kept in float32.
    """
    N, C, H, W = x.shape
    HW = H * W
    out_dtype = jnp.dtype(out_dtype or x.dtype)
    # TODO(synk): if H*W is not a multiple of 128, stores on the lane axis are
    # masked (correct but slower); packing several LN groups per 128-lane row
    # with masked mean/var would recover lane density.

    if steps == 0 or mem is None:
        outs = _rlif_call_nomem(x.reshape(N * C, HW), out_dtype, row_tile)
    elif mem.ndim == 4:
        outs = _rlif_call_flat(x.reshape(N * C, HW), mem.reshape(N * C, HW),
                               out_dtype, row_tile)
    else:
        outs = _rlif_call_bcast(x.reshape(N, C, HW), mem.reshape(C, HW),
                                out_dtype, row_tile)

    # TODO(synk): nn.Dropout(dp_rate) path (use_dropout=True, training=True) is
    # not implemented; the module's default config has use_dropout=False.
    return tuple(o.reshape(N, C, H, W) for o in outs)


# --------------------------------------------------------------------------
# Pure-JAX reference
# --------------------------------------------------------------------------
def _rlif_reference(x, mem):
    x = jnp.asarray(x, jnp.float32)
    if mem is None:
        mem = jnp.zeros(x.shape[1:], dtype=jnp.float32)
    mem = jnp.asarray(mem, jnp.float32)
    mu = jnp.mean(x, axis=(-2, -1), keepdims=True)
    xc = x - mu
    var = jnp.mean(xc * xc, axis=(-2, -1), keepdims=True)
    xn = xc * jax.lax.rsqrt(var + LN_EPS)
    mp = mem + xn                        # broadcasts (C,H,W) or (N,C,H,W) state
    keep = (mp - THRESHOLD > 0).astype(jnp.float32)
    memv = mp * keep
    out = memv / (memv + SPIKE_EPS)
    new_mem = LEAK * (mp - out * THRESHOLD)
    return out, memv, new_mem


if __name__ == "__main__":
    key = jax.random.PRNGKey(0)
    k1, k2, k3, k4 = jax.random.split(key, 4)
    N, C, H, W = 2, 4, 16, 16

    x = jax.random.normal(k1, (N, C, H, W), dtype=jnp.float32)
    x1 = jax.random.normal(k2, (N, C, H, W), dtype=jnp.float32)
    mem_c = 0.5 * jax.random.normal(k3, (C, H, W), dtype=jnp.float32)

    checks = []

    # step 0: membrane state reset to zero -> mem-free kernel variant
    out0, memv0, mem1 = rlif_forward(x, mem=None, steps=0)
    checks.append(((out0, memv0, mem1), _rlif_reference(x, None)))

    # step 1 with the (N, C, H, W) state from step 0 (reference computed first:
    # the flat path aliases its reshaped mem operand into the new-mem output)
    ref1 = _rlif_reference(x1, mem1)
    out1, memv1, mem2 = rlif_forward(x1, mem=mem1, steps=1)
    checks.append(((out1, memv1, mem2), ref1))

    # (C, H, W) persistent-state path (state shared across the batch via the grid)
    checks_ref2 = _rlif_reference(x, mem_c)
    out2, memv2, mem3 = rlif_forward(x, mem=mem_c, steps=1)
    checks.append(((out2, memv2, mem3), checks_ref2))

    # bf16 inputs streamed natively; spike mask emitted in bf16 (0/1 exact)
    xb = jax.random.normal(k4, (N, C, H, W), dtype=jnp.float32).astype(jnp.bfloat16)
    out3, memv3, mem4 = rlif_forward(xb, mem=None, steps=0)
    checks.append(((out3, memv3, mem4), _rlif_reference(xb.astype(jnp.float32), None)))

    # non-multiple-of-8 row count with a forced 8-row tile: exercises the
    # cdiv-grid masked-boundary path (no jnp.pad / output re-slicing)
    x5 = jax.random.normal(k1, (2, 5, H, W), dtype=jnp.float32)
    m5 = 0.25 * jax.random.normal(k2, (2, 5, H, W), dtype=jnp.float32)
    ref5 = _rlif_reference(x5, m5)
    out5, memv5, mem5 = rlif_forward(x5, mem=m5, steps=1, row_tile=8)
    checks.append(((out5, memv5, mem5), ref5))

    jax.block_until_ready([g for got, _ in checks for g in got])

    for got, ref in checks:
        for g, r in zip(got, ref):
            g = jnp.asarray(g, jnp.float32)
            r = jnp.asarray(r, jnp.float32)
            err = float(jnp.max(jnp.abs(g - r)))
            assert jnp.allclose(g, r, atol=1e-5, rtol=1e-5), f"max abs err {err}"

    print("KERNEL_OK")
</pallas_src>

<mosaic_0001>
module attributes {stable_mosaic.version = 11 : i64} {
  func.func @_rlif_kernel_nomem(%arg0: i32, %arg1: memref<8x256xf32, #tpu.memory_space<vmem>>, %arg2: memref<8x256xf32, #tpu.memory_space<vmem>>, %arg3: memref<8x256xf32, #tpu.memory_space<vmem>>, %arg4: memref<8x256xf32, #tpu.memory_space<vmem>>) attributes {dimension_semantics = [#tpu.dimension_semantics<parallel>], iteration_bounds = array<i64: 1>, scalar_prefetch = 0 : i64, scratch_operands = 0 : i64, tpu.core_type = #tpu.core_type<tc>, window_params = [{transform_indices = @transform_0, window_bounds = array<i64: 8, 256>}, {transform_indices = @transform_1, window_bounds = array<i64: 8, 256>}, {transform_indices = @transform_2, window_bounds = array<i64: 8, 256>}, {transform_indices = @transform_3, window_bounds = array<i64: 8, 256>}]} {
    %c0 = arith.constant 0 : index
    %c0_0 = arith.constant 0 : index
    %0 = vector.load %arg1[%c0, %c0_0] : memref<8x256xf32, #tpu.memory_space<vmem>>, vector<8x256xf32>
    %cst = arith.constant dense<0.000000e+00> : vector<8xf32>
    %1 = vector.multi_reduction <add>, %0, %cst [1] : vector<8x256xf32> to vector<8xf32>
    %2 = vector.shape_cast %1 : vector<8xf32> to vector<8x1xf32>
    %cst_1 = arith.constant 2.560000e+02 : f32
    %3 = vector.broadcast %cst_1 : f32 to vector<8x1xf32>
    %4 = arith.divf %2, %3 : vector<8x1xf32>
    %5 = vector.broadcast %4 : vector<8x1xf32> to vector<8x256xf32>
    %6 = arith.subf %0, %5 : vector<8x256xf32>
    %7 = arith.mulf %6, %6 : vector<8x256xf32>
    %cst_2 = arith.constant dense<0.000000e+00> : vector<8xf32>
    %8 = vector.multi_reduction <add>, %7, %cst_2 [1] : vector<8x256xf32> to vector<8xf32>
    %9 = vector.shape_cast %8 : vector<8xf32> to vector<8x1xf32>
    %cst_3 = arith.constant 2.560000e+02 : f32
    %10 = vector.broadcast %cst_3 : f32 to vector<8x1xf32>
    %11 = arith.divf %9, %10 : vector<8x1xf32>
    %cst_4 = arith.constant 9.99999974E-6 : f32
    %12 = vector.broadcast %cst_4 : f32 to vector<8x1xf32>
    %13 = arith.addf %11, %12 : vector<8x1xf32>
    %14 = math.rsqrt %13 : vector<8x1xf32>
    %15 = vector.broadcast %14 : vector<8x1xf32> to vector<8x256xf32>
    %16 = arith.mulf %6, %15 : vector<8x256xf32>
    %cst_5 = arith.constant 0.000000e+00 : f32
    %17 = vector.broadcast %cst_5 : f32 to vector<8x256xf32>
    %18 = arith.addf %17, %16 : vector<8x256xf32>
    %cst_6 = arith.constant 1.000000e+00 : f32
    %19 = vector.broadcast %cst_6 : f32 to vector<8x256xf32>
    %20 = arith.subf %18, %19 : vector<8x256xf32>
    %cst_7 = arith.constant 0.000000e+00 : f32
    %21 = vector.broadcast %cst_7 : f32 to vector<8x256xf32>
    %22 = arith.cmpf ogt, %20, %21 : vector<8x256xf32>
    %23 = arith.extui %22 : vector<8x256xi1> to vector<8x256xi32>
    %24 = arith.sitofp %23 : vector<8x256xi32> to vector<8x256xf32>
    %25 = arith.mulf %18, %24 : vector<8x256xf32>
    %c0_8 = arith.constant 0 : index
    %c0_9 = arith.constant 0 : index
    %26 = vector.load %arg2[%c0_8, %c0_9] : memref<8x256xf32, #tpu.memory_space<vmem>>, vector<8x256xf32>
    tpu.vector_store %arg2[%c0_8, %c0_9], %24 {strides = array<i32>} : memref<8x256xf32, #tpu.memory_space<vmem>>, vector<8x256xf32>,
    %c0_10 = arith.constant 0 : index
    %c0_11 = arith.constant 0 : index
    %27 = vector.load %arg3[%c0_10, %c0_11] : memref<8x256xf32, #tpu.memory_space<vmem>>, vector<8x256xf32>
    tpu.vector_store %arg3[%c0_10, %c0_11], %25 {strides = array<i32>} : memref<8x256xf32, #tpu.memory_space<vmem>>, vector<8x256xf32>,
    %cst_12 = arith.constant 1.000000e+00 : f32
    %28 = vector.broadcast %cst_12 : f32 to vector<8x256xf32>
    %29 = arith.mulf %24, %28 : vector<8x256xf32>
    %30 = arith.subf %18, %29 : vector<8x256xf32>
    %cst_13 = arith.constant 3.000000e-01 : f32
    %31 = vector.broadcast %cst_13 : f32 to vector<8x256xf32>
    %32 = arith.mulf %31, %30 : vector<8x256xf32>
    %c0_14 = arith.constant 0 : index
    %c0_15 = arith.constant 0 : index
    %33 = vector.load %arg4[%c0_14, %c0_15] : memref<8x256xf32, #tpu.memory_space<vmem>>, vector<8x256xf32>
    tpu.vector_store %arg4[%c0_14, %c0_15], %32 {strides = array<i32>} : memref<8x256xf32, #tpu.memory_space<vmem>>, vector<8x256xf32>,
    return
  }
  func.func @transform_0(%arg0: i32) -> (i32, i32) {
    %c0_i32 = arith.constant 0 : i32
    %c0_i32_0 = arith.constant 0 : i32
    return %arg0, %c0_i32 : i32, i32
  }
  func.func @transform_1(%arg0: i32) -> (i32, i32) {
    %c0_i32 = arith.constant 0 : i32
    %c0_i32_0 = arith.constant 0 : i32
    return %arg0, %c0_i32 : i32, i32
  }
  func.func @transform_2(%arg0: i32) -> (i32, i32) {
    %c0_i32 = arith.constant 0 : i32
    %c0_i32_0 = arith.constant 0 : i32
    return %arg0, %c0_i32 : i32, i32
  }
  func.func @transform_3(%arg0: i32) -> (i32, i32) {
    %c0_i32 = arith.constant 0 : i32
    %c0_i32_0 = arith.constant 0 : i32
    return %arg0, %c0_i32 : i32, i32
  }
}

</mosaic_0001>

<llo_original>
// kernel: tpu_custom_call.1
$region0: #{tpu_custom_call.1}
  #allocation0 [shape = 'u32[]', space=smem, size = 0x4, offset = 0x4, fixed_abs, tag = 'smem constant byte address 0x4 - core index']
  #allocation1 [shape = 'u32[144,128]{1,0:T(1,128)}', space=vmem, size = 0x12000, scoped, tag = 'internal scratch']
  %s0 = inlined_call_operand.hbm [shape: f32[8,256], index: 0, kind: input, shape index: {}]
  %s1 = inlined_call_operand.hbm [shape: f32[8,256], index: 1, kind: output, shape index: {0}]
  %s2 = inlined_call_operand.hbm [shape: f32[8,256], index: 2, kind: output, shape index: {1}]
  %s3 = inlined_call_operand.hbm [shape: f32[8,256], index: 3, kind: output, shape index: {2}]
  %4 = xla_tuple %s1, %s2, %s3
  %s5 = sld [smem:[#allocation0]]
  $region34: #{tpu_custom_call.1} parent=0
    _
  %s7 = ssub.s32 1, %s5
  %s8 = scalar_select 0, %s7, %s5
  $region1: #{tpu_custom_call.1} parent=0
    #allocation2 [shape = 'u8[8192]{0}', space=vmem, size = 0x2000, scoped, tag = 'input window, operand 0, single buffered']
    #allocation3 [shape = 's32[1]{0}', space=sflag, size = 0x4, scoped, tag = 'scoped memory for tpu_custom_call.1']
    #allocation4 [shape = 's32[1]{0}', space=sflag, size = 0x4, scoped, tag = 'scoped memory for tpu_custom_call.1']
    #allocation5 [shape = 'u8[8192]{0}', space=vmem, size = 0x2000, scoped, tag = 'output window, operand 0, single buffered']
    #allocation6 [shape = 'u8[8192]{0}', space=vmem, size = 0x2000, scoped, tag = 'output window, operand 1, single buffered']
    #allocation7 [shape = 's32[1]{0}', space=sflag, size = 0x4, scoped, tag = 'scoped memory for tpu_custom_call.1']
    #allocation8 [shape = 'u8[8192]{0}', space=vmem, size = 0x2000, scoped, tag = 'output window, operand 2, single buffered']
    %9 = vsyncpa [#allocation3], 0
    %10 = vsyncpa [#allocation4], 0
    %11 = vsyncpa [#allocation7], 0
    // Predicated region
    $region2: #{tpu_custom_call.1} parent=1 // pred_check
      _
    $region3: #{tpu_custom_call.1} parent=1 // pred_check_branch
      %13 = sbr.rel (0) target = $region5
    $region4: #{tpu_custom_call.1} parent=1 // pred_region
      %s15 = ssub.s32 256, 256
      %16 = vsyncadd [#allocation3], %s15
      %s18 = sshll.u32 [#allocation2], 4
      %s19 = int_to_ptr.vmem [resolvable:$true] %s18
      %21 = dma.hbm_to_vmem [thread:$0]  %s0, 256, %s19, [#allocation3]
    $region5: #{tpu_custom_call.1} parent=1 // pred_fallthru
      _
    // Predicated region
    $region6: #{tpu_custom_call.1} parent=1 // pred_check
      _
    $region7: #{tpu_custom_call.1} parent=1 // pred_check_branch
      %23 = sbr.rel (0) target = $region9
    $region8: #{tpu_custom_call.1} parent=1 // pred_region
      %24 = dma.done [#allocation3], 256
    $region9: #{tpu_custom_call.1} parent=1 // pred_fallthru
      _
    %v25 = vld [vmem:[#allocation2] sm:$0xff]
    %v26 = vld [vmem:[#allocation2 + $0x8] sm:$0xff]
    %v27 = vadd.f32 %v25, %v26
    %28 = vadd.xlane.f32.xlu0 %v27
    %v29 = vpop.xlane.xlu0 %28
    %v30 = vrcp.pop 256.0
    %v31 = vmul.f32 %v29, %v30
    %v32 = vsub.f32 %v25, %v31
    %v33 = vsub.f32 %v26, %v31
    %v34 = vmul.f32 %v32, %v32
    %v35 = vmul.f32 %v33, %v33
    %v36 = vadd.f32 %v34, %v35
    %37 = vadd.xlane.f32.xlu0 %v36
    %v38 = vpop.xlane.xlu0 %37
    %v39 = vmul.f32 %v38, %v30
    %v40 = vadd.f32 %v39, 1e-05
    %v41 = vrsqrt.pop %v40
    %v42 = vmul.f32 %v32, %v41
    %v43 = vmul.f32 %v33, %v41
    %v44 = vadd.f32 %v42, 0.0
    %v45 = vadd.f32 %v43, 0.0
    %v46 = vsub.f32 %v44, 1.0
    %v47 = vsub.f32 %v45, 1.0
    %vm48 = vcmp.gt.f32.partialorder %v46, 0.0
    %vm49 = vcmp.gt.f32.partialorder %v47, 0.0
    %v50 = vsel %vm48, 1, 0
    %v51 = vsel %vm49, 1, 0
    %v52 = vcvt.s32.f32 %v50
    %v53 = vcvt.s32.f32 %v51
    %v54 = vmul.f32 %v44, %v52
    %v55 = vmul.f32 %v45, %v53
    %56 = vst [vmem:[#allocation5] sm:$0xff] %v52
    %57 = vst [vmem:[#allocation5 + $0x8] sm:$0xff] %v53
    %58 = vst [vmem:[#allocation6] sm:$0xff] %v54
    %59 = vst [vmem:[#allocation6 + $0x8] sm:$0xff] %v55
    %v60 = vsub.f32 %v44, %v52
    %v61 = vsub.f32 %v45, %v53
    %v62 = vmul.f32 %v60, 0.3
    %v63 = vmul.f32 %v61, 0.3
    %64 = vst [vmem:[#allocation8] sm:$0xff] %v62
    %65 = vst [vmem:[#allocation8 + $0x8] sm:$0xff] %v63
    // Predicated region
    $region10: #{tpu_custom_call.1} parent=1 // pred_check
      _
    $region11: #{tpu_custom_call.1} parent=1 // pred_check_branch
      %67 = sbr.rel (0) target = $region13
    $region12: #{tpu_custom_call.1} parent=1 // pred_region
      %s69 = ssub.s32 256, 256
      %70 = vsyncadd [#allocation4], %s69
      %s72 = sshll.u32 [#allocation5], 4
      %s73 = int_to_ptr.vmem [resolvable:$true] %s72
      %75 = dma.vmem_to_hbm [thread:$0]  %s73, 256, %s1, [#allocation4]
    $region13: #{tpu_custom_call.1} parent=1 // pred_fallthru
      _
    // Predicated region
    $region14: #{tpu_custom_call.1} parent=1 // pred_check
      _
    $region15: #{tpu_custom_call.1} parent=1 // pred_check_branch
      %77 = sbr.rel (0) target = $region17
    $region16: #{tpu_custom_call.1} parent=1 // pred_region
      %s79 = ssub.s32 256, 256
      %80 = vsyncadd [#allocation7], %s79
      %s82 = sshll.u32 [#allocation6], 4
      %s83 = int_to_ptr.vmem [resolvable:$true] %s82
      %85 = dma.vmem_to_hbm [thread:$0]  %s83, 256, %s2, [#allocation7]
    $region17: #{tpu_custom_call.1} parent=1 // pred_fallthru
      _
    // Predicated region
    $region18: #{tpu_custom_call.1} parent=1 // pred_check
      _
    $region19: #{tpu_custom_call.1} parent=1 // pred_check_branch
      %87 = sbr.rel (0) target = $region21
    $region20: #{tpu_custom_call.1} parent=1 // pred_region
      %s89 = ssub.s32 256, 256
      %90 = vsyncadd [#allocation7], %s89
      %s92 = sshll.u32 [#allocation8], 4
      %s93 = int_to_ptr.vmem [resolvable:$true] %s92
      %95 = dma.vmem_to_hbm [thread:$0]  %s93, 256, %s3, [#allocation7]
    $region21: #{tpu_custom_call.1} parent=1 // pred_fallthru
      _
    // Predicated region
    $region22: #{tpu_custom_call.1} parent=1 // pred_check
      _
    $region23: #{tpu_custom_call.1} parent=1 // pred_check_branch
      %97 = sbr.rel (0) target = $region25
    $region24: #{tpu_custom_call.1} parent=1 // pred_region
      %98 = dma.done [#allocation4], 256
    $region25: #{tpu_custom_call.1} parent=1 // pred_fallthru
      _
    // Predicated region
    $region26: #{tpu_custom_call.1} parent=1 // pred_check
      _
    $region27: #{tpu_custom_call.1} parent=1 // pred_check_branch
      %100 = sbr.rel (0) target = $region29
    $region28: #{tpu_custom_call.1} parent=1 // pred_region
      %101 = dma.done [#allocation7], 256
    $region29: #{tpu_custom_call.1} parent=1 // pred_fallthru
      _
    // Predicated region
    $region30: #{tpu_custom_call.1} parent=1 // pred_check
      _
    $region31: #{tpu_custom_call.1} parent=1 // pred_check_branch
      %103 = sbr.rel (0) target = $region33
    $region32: #{tpu_custom_call.1} parent=1 // pred_region
      %104 = dma.done [#allocation7], 256
    $region33: #{tpu_custom_call.1} parent=1 // pred_fallthru
      _
    %105 = vsyncpa [#allocation3], 1
    %106 = vsyncpa [#allocation4], 1
    %107 = vsyncpa [#allocation7], 1

</llo_original>
